<compile_context>
chip_gen: v7x
topology: tpu7x:2x2x1
jax: 0.10.0
libtpu: 0.0.40
codegen_flags: <defaults>
</compile_context>

<pallas_src>
import jax
import jax.numpy as jnp
from jax import lax
from jax.experimental import pallas as pl
from jax.experimental.pallas import tpu as pltpu

HIDDEN = 20            # nn.Linear(1, 20)
_LANE = 512            # lane-dense last dim (multiple of 128 -> unmasked vst)
_MAX_TILE_ROWS = 1024  # (1024, 512) f32 tile = 2 MiB per buffer
_STRIP_ROWS = 8        # register-blocked strip = 4 f32 vregs


def _selector_kernel(r_ref, c_ref, ab_ref, x_ref, o_ref):
    # r_ref : (20,) SMEM  -- kink positions r_j = -b1_j / w1_j
    # c_ref : (20,) SMEM  -- folded slopes  c_j = 0.25 * w2_j * |w1_j|
    # ab_ref: (2,)  SMEM  -- [A, B] linear term of 0.5*logit
    # x_ref : (block_rows, 512) VMEM (native float dtype)
    # o_ref : (block_rows, 512) VMEM (native float dtype)
    block_rows = x_ref.shape[0]

    # Hoist the SMEM scalar reads out of the strip loop (sregs; the per-use
    # scalar->vreg splat inside the loop is cheap, whereas hoisting 42
    # strip-shaped broadcasts would blow the 64-vreg budget and spill).
    a_s = ab_ref[0]
    b_s = ab_ref[1]
    r_s = [r_ref[j] for j in range(HIDDEN)]
    c_s = [c_ref[j] for j in range(HIDDEN)]

    def strip(row, nrows):
        x = x_ref[pl.ds(row, nrows), :].astype(jnp.float32)
        # u = 0.5 * logit = A*x + B + sum_j c_j * |x - r_j|
        # Two independent accumulators break the 20-deep serial add chain.
        acc0 = a_s * x + b_s
        acc1 = c_s[0] * jnp.abs(x - r_s[0])
        for j in range(1, HIDDEN):
            term = c_s[j] * jnp.abs(x - r_s[j])
            if j & 1:
                acc1 = acc1 + term
            else:
                acc0 = acc0 + term
        u = acc0 + acc1
        # sigmoid(t) = 0.5*tanh(0.5*t) + 0.5 ; the 0.5*t is already folded into
        # A, B, c, so only the EUP tanh plus one mul+add remain.
        o_ref[pl.ds(row, nrows), :] = (0.5 * jnp.tanh(u) + 0.5).astype(o_ref.dtype)

    n_strips = block_rows // _STRIP_ROWS
    rem = block_rows % _STRIP_ROWS

    if n_strips > 0:
        def body(s, carry):
            strip(pl.multiple_of(s * _STRIP_ROWS, _STRIP_ROWS), _STRIP_ROWS)
            return carry
        lax.fori_loop(0, n_strips, body, 0, unroll=min(2, n_strips))
    if rem:  # static remainder (tiny inputs / blocks not a multiple of 8 rows)
        strip(n_strips * _STRIP_ROWS, rem)


def _fold_params(w1, b1, w2, b2):
    """Fold the 1->20->1 MLP + sigmoid into (r, c, [A, B]) for the kernel."""
    w1f = jnp.asarray(w1, jnp.float32).reshape(HIDDEN)
    b1f = jnp.asarray(b1, jnp.float32).reshape(HIDDEN)
    w2f = jnp.asarray(w2, jnp.float32).reshape(HIDDEN)
    b2f = jnp.asarray(b2, jnp.float32).reshape(())
    nz = w1f != 0.0
    safe_w1 = jnp.where(nz, w1f, 1.0)
    r = jnp.where(nz, -b1f / safe_w1, 0.0)                 # kink positions
    c = jnp.where(nz, 0.25 * w2f * jnp.abs(w1f), 0.0)      # 0.5(sigmoid) * 0.5(relu) * w2*|w1|
    a = 0.25 * jnp.sum(jnp.where(nz, w2f * w1f, 0.0))
    b = (0.25 * jnp.sum(jnp.where(nz, w2f * b1f, 0.0))
         + 0.5 * jnp.sum(jnp.where(nz, 0.0, w2f * jnp.maximum(b1f, 0.0)))  # w1_j == 0 units
         + 0.5 * b2f)
    return r, c, jnp.stack([a, b])


def selector_forward(x, w1, b1, w2, b2):
    """x: any-shape float array. Params: w1 (20,1), b1 (20,), w2 (1,20), b2 (1,)."""
    orig_shape = x.shape
    orig_dtype = x.dtype
    n = x.size
    if n == 0:
        return jnp.zeros(orig_shape, orig_dtype)

    r, c, ab = _fold_params(w1, b1, w2, b2)

    # Keep x in its native floating dtype (kernel upcasts per strip to f32);
    # non-float inputs fall back to f32.
    if orig_dtype in (jnp.dtype(jnp.float32), jnp.dtype(jnp.bfloat16), jnp.dtype(jnp.float16)):
        io_dtype = orig_dtype
    else:
        io_dtype = jnp.dtype(jnp.float32)

    xf = x.reshape(-1).astype(io_dtype)
    # Pad only up to the next multiple of the lane width (needed to view the
    # flat array as a (rows, 512) slab).  The row axis is left ragged and
    # handled by Pallas boundary blocks, so multiples of 512 are never copied.
    padded_n = -(-n // _LANE) * _LANE
    if padded_n != n:
        xf = jnp.pad(xf, (0, padded_n - n))
    rows = padded_n // _LANE
    x2d = xf.reshape(rows, _LANE)

    rows8 = ((rows + 7) // 8) * 8
    if rows8 <= _MAX_TILE_ROWS:
        if rows8 >= 16:
            # Split a single-tile input into (at least) two grid steps so both
            # v7x TensorCores get work.
            rows_per_tile = ((rows8 // 2 + 7) // 8) * 8
        else:
            rows_per_tile = rows          # tiny input: block == full row dim
    else:
        rows_per_tile = _MAX_TILE_ROWS
    grid = (-(-rows // rows_per_tile),)   # cdiv; last block may be ragged

    smem = pl.BlockSpec(memory_space=pltpu.MemorySpace.SMEM)
    out2d = pl.pallas_call(
        _selector_kernel,
        out_shape=jax.ShapeDtypeStruct((rows, _LANE), io_dtype),
        grid_spec=pltpu.PrefetchScalarGridSpec(
            num_scalar_prefetch=0,
            grid=grid,
            in_specs=[
                smem,                                                    # r  (20,)
                smem,                                                    # c  (20,)
                smem,                                                    # ab (2,)
                pl.BlockSpec((rows_per_tile, _LANE), lambda i: (i, 0)),  # x tile
            ],
            out_specs=pl.BlockSpec((rows_per_tile, _LANE), lambda i: (i, 0)),
        ),
        # TODO(synk): on v7x consider pltpu.CORE_PARALLEL on the row axis; plain
        # "parallel" is kept here for portability across generations.
        compiler_params=pltpu.CompilerParams(
            dimension_semantics=("parallel",)),
    )(r, c, ab, x2d)

    out = out2d.reshape(-1)
    if padded_n != n:
        out = out[:n]
    return out.reshape(orig_shape).astype(orig_dtype)


def _init_params(key):
    """Deterministic init mimicking PyTorch nn.Linear default U(-1/sqrt(fan_in), +)."""
    k1, k2, k3, k4 = jax.random.split(key, 4)
    bound1 = 1.0  # fan_in = 1
    w1 = jax.random.uniform(k1, (HIDDEN, 1), jnp.float32, -bound1, bound1)
    b1 = jax.random.uniform(k2, (HIDDEN,), jnp.float32, -bound1, bound1)
    bound2 = 1.0 / jnp.sqrt(float(HIDDEN))  # fan_in = 20
    w2 = jax.random.uniform(k3, (1, HIDDEN), jnp.float32, -bound2, bound2)
    b2 = jax.random.uniform(k4, (1,), jnp.float32, -bound2, bound2)
    return w1, b1, w2, b2


def _reference(x, w1, b1, w2, b2):
    # Plain-JAX reference of the PyTorch forward (uses the *unfolded* params).
    xe = x[..., None]                       # (..., 1)
    h = jnp.maximum(xe @ w1.T + b1, 0.0)    # (..., 20)
    out = jax.nn.sigmoid(h @ w2.T + b2)     # (..., 1)
    return out[..., 0]


if __name__ == "__main__":
    key = jax.random.PRNGKey(0)
    kx, kp = jax.random.split(key)
    w1, b1, w2, b2 = _init_params(kp)

    # (8,128): single tiny block; (5,37): ragged lane padding; (600,512):
    # multi-step grid with a ragged last row-block and no jnp.pad copy.
    shapes = [(8, 128), (5, 37), (600, 512)]
    for i, shape in enumerate(shapes):
        xi = jax.random.normal(jax.random.fold_in(kx, i), shape, jnp.float32)
        out = jax.block_until_ready(selector_forward(xi, w1, b1, w2, b2))
        ref = _reference(xi, w1, b1, w2, b2)
        assert out.shape == shape and out.dtype == xi.dtype
        assert jnp.allclose(out, ref, atol=5e-5, rtol=1e-4), f"mismatch at {shape}"

    # Native bf16 I/O path (compute stays f32 in-kernel).
    xb = jax.random.normal(jax.random.fold_in(kx, 99), (64, 640),
                           jnp.float32).astype(jnp.bfloat16)
    outb = jax.block_until_ready(selector_forward(xb, w1, b1, w2, b2))
    refb = _reference(xb.astype(jnp.float32), w1, b1, w2, b2)
    assert outb.shape == xb.shape and outb.dtype == jnp.bfloat16
    assert jnp.allclose(outb.astype(jnp.float32), refb, atol=1e-2), "bf16 mismatch"

    print("KERNEL_OK")
</pallas_src>

<mosaic_0001>
module attributes {stable_mosaic.version = 11 : i64} {
  func.func @_selector_kernel(%arg0: i32, %arg1: memref<20xf32, #tpu.memory_space<smem>>, %arg2: memref<20xf32, #tpu.memory_space<smem>>, %arg3: memref<2xf32, #tpu.memory_space<smem>>, %arg4: memref<2x512xf32, #tpu.memory_space<vmem>>, %arg5: memref<2x512xf32, #tpu.memory_space<vmem>>) attributes {dimension_semantics = [#tpu.dimension_semantics<parallel>], iteration_bounds = array<i64: 1>, scalar_prefetch = 0 : i64, scratch_operands = 0 : i64, tpu.core_type = #tpu.core_type<tc>, window_params = [{transform_indices = @transform_0, window_bounds = array<i64: 20>}, {transform_indices = @transform_1, window_bounds = array<i64: 20>}, {transform_indices = @transform_2, window_bounds = array<i64: 2>}, {transform_indices = @transform_3, window_bounds = array<i64: 2, 512>}, {transform_indices = @transform_4, window_bounds = array<i64: 2, 512>}]} {
    %c0 = arith.constant 0 : index
    %0 = memref.load %arg3[%c0] : memref<2xf32, #tpu.memory_space<smem>>
    %c1 = arith.constant 1 : index
    %1 = memref.load %arg3[%c1] : memref<2xf32, #tpu.memory_space<smem>>
    %c0_0 = arith.constant 0 : index
    %2 = memref.load %arg1[%c0_0] : memref<20xf32, #tpu.memory_space<smem>>
    %c1_1 = arith.constant 1 : index
    %3 = memref.load %arg1[%c1_1] : memref<20xf32, #tpu.memory_space<smem>>
    %c2 = arith.constant 2 : index
    %4 = memref.load %arg1[%c2] : memref<20xf32, #tpu.memory_space<smem>>
    %c3 = arith.constant 3 : index
    %5 = memref.load %arg1[%c3] : memref<20xf32, #tpu.memory_space<smem>>
    %c4 = arith.constant 4 : index
    %6 = memref.load %arg1[%c4] : memref<20xf32, #tpu.memory_space<smem>>
    %c5 = arith.constant 5 : index
    %7 = memref.load %arg1[%c5] : memref<20xf32, #tpu.memory_space<smem>>
    %c6 = arith.constant 6 : index
    %8 = memref.load %arg1[%c6] : memref<20xf32, #tpu.memory_space<smem>>
    %c7 = arith.constant 7 : index
    %9 = memref.load %arg1[%c7] : memref<20xf32, #tpu.memory_space<smem>>
    %c8 = arith.constant 8 : index
    %10 = memref.load %arg1[%c8] : memref<20xf32, #tpu.memory_space<smem>>
    %c9 = arith.constant 9 : index
    %11 = memref.load %arg1[%c9] : memref<20xf32, #tpu.memory_space<smem>>
    %c10 = arith.constant 10 : index
    %12 = memref.load %arg1[%c10] : memref<20xf32, #tpu.memory_space<smem>>
    %c11 = arith.constant 11 : index
    %13 = memref.load %arg1[%c11] : memref<20xf32, #tpu.memory_space<smem>>
    %c12 = arith.constant 12 : index
    %14 = memref.load %arg1[%c12] : memref<20xf32, #tpu.memory_space<smem>>
    %c13 = arith.constant 13 : index
    %15 = memref.load %arg1[%c13] : memref<20xf32, #tpu.memory_space<smem>>
    %c14 = arith.constant 14 : index
    %16 = memref.load %arg1[%c14] : memref<20xf32, #tpu.memory_space<smem>>
    %c15 = arith.constant 15 : index
    %17 = memref.load %arg1[%c15] : memref<20xf32, #tpu.memory_space<smem>>
    %c16 = arith.constant 16 : index
    %18 = memref.load %arg1[%c16] : memref<20xf32, #tpu.memory_space<smem>>
    %c17 = arith.constant 17 : index
    %19 = memref.load %arg1[%c17] : memref<20xf32, #tpu.memory_space<smem>>
    %c18 = arith.constant 18 : index
    %20 = memref.load %arg1[%c18] : memref<20xf32, #tpu.memory_space<smem>>
    %c19 = arith.constant 19 : index
    %21 = memref.load %arg1[%c19] : memref<20xf32, #tpu.memory_space<smem>>
    %c0_2 = arith.constant 0 : index
    %22 = memref.load %arg2[%c0_2] : memref<20xf32, #tpu.memory_space<smem>>
    %c1_3 = arith.constant 1 : index
    %23 = memref.load %arg2[%c1_3] : memref<20xf32, #tpu.memory_space<smem>>
    %c2_4 = arith.constant 2 : index
    %24 = memref.load %arg2[%c2_4] : memref<20xf32, #tpu.memory_space<smem>>
    %c3_5 = arith.constant 3 : index
    %25 = memref.load %arg2[%c3_5] : memref<20xf32, #tpu.memory_space<smem>>
    %c4_6 = arith.constant 4 : index
    %26 = memref.load %arg2[%c4_6] : memref<20xf32, #tpu.memory_space<smem>>
    %c5_7 = arith.constant 5 : index
    %27 = memref.load %arg2[%c5_7] : memref<20xf32, #tpu.memory_space<smem>>
    %c6_8 = arith.constant 6 : index
    %28 = memref.load %arg2[%c6_8] : memref<20xf32, #tpu.memory_space<smem>>
    %c7_9 = arith.constant 7 : index
    %29 = memref.load %arg2[%c7_9] : memref<20xf32, #tpu.memory_space<smem>>
    %c8_10 = arith.constant 8 : index
    %30 = memref.load %arg2[%c8_10] : memref<20xf32, #tpu.memory_space<smem>>
    %c9_11 = arith.constant 9 : index
    %31 = memref.load %arg2[%c9_11] : memref<20xf32, #tpu.memory_space<smem>>
    %c10_12 = arith.constant 10 : index
    %32 = memref.load %arg2[%c10_12] : memref<20xf32, #tpu.memory_space<smem>>
    %c11_13 = arith.constant 11 : index
    %33 = memref.load %arg2[%c11_13] : memref<20xf32, #tpu.memory_space<smem>>
    %c12_14 = arith.constant 12 : index
    %34 = memref.load %arg2[%c12_14] : memref<20xf32, #tpu.memory_space<smem>>
    %c13_15 = arith.constant 13 : index
    %35 = memref.load %arg2[%c13_15] : memref<20xf32, #tpu.memory_space<smem>>
    %c14_16 = arith.constant 14 : index
    %36 = memref.load %arg2[%c14_16] : memref<20xf32, #tpu.memory_space<smem>>
    %c15_17 = arith.constant 15 : index
    %37 = memref.load %arg2[%c15_17] : memref<20xf32, #tpu.memory_space<smem>>
    %c16_18 = arith.constant 16 : index
    %38 = memref.load %arg2[%c16_18] : memref<20xf32, #tpu.memory_space<smem>>
    %c17_19 = arith.constant 17 : index
    %39 = memref.load %arg2[%c17_19] : memref<20xf32, #tpu.memory_space<smem>>
    %c18_20 = arith.constant 18 : index
    %40 = memref.load %arg2[%c18_20] : memref<20xf32, #tpu.memory_space<smem>>
    %c19_21 = arith.constant 19 : index
    %41 = memref.load %arg2[%c19_21] : memref<20xf32, #tpu.memory_space<smem>>
    %c0_22 = arith.constant 0 : index
    %c0_23 = arith.constant 0 : index
    %42 = vector.load %arg4[%c0_22, %c0_23] : memref<2x512xf32, #tpu.memory_space<vmem>>, vector<2x512xf32>
    %43 = vector.broadcast %0 : f32 to vector<2x512xf32>
    %44 = arith.mulf %43, %42 : vector<2x512xf32>
    %45 = vector.broadcast %1 : f32 to vector<2x512xf32>
    %46 = arith.addf %44, %45 : vector<2x512xf32>
    %47 = vector.broadcast %2 : f32 to vector<2x512xf32>
    %48 = arith.subf %42, %47 : vector<2x512xf32>
    %49 = math.absf %48 : vector<2x512xf32>
    %50 = vector.broadcast %22 : f32 to vector<2x512xf32>
    %51 = arith.mulf %50, %49 : vector<2x512xf32>
    %52 = vector.broadcast %3 : f32 to vector<2x512xf32>
    %53 = arith.subf %42, %52 : vector<2x512xf32>
    %54 = math.absf %53 : vector<2x512xf32>
    %55 = vector.broadcast %23 : f32 to vector<2x512xf32>
    %56 = arith.mulf %55, %54 : vector<2x512xf32>
    %57 = arith.addf %51, %56 : vector<2x512xf32>
    %58 = vector.broadcast %4 : f32 to vector<2x512xf32>
    %59 = arith.subf %42, %58 : vector<2x512xf32>
    %60 = math.absf %59 : vector<2x512xf32>
    %61 = vector.broadcast %24 : f32 to vector<2x512xf32>
    %62 = arith.mulf %61, %60 : vector<2x512xf32>
    %63 = arith.addf %46, %62 : vector<2x512xf32>
    %64 = vector.broadcast %5 : f32 to vector<2x512xf32>
    %65 = arith.subf %42, %64 : vector<2x512xf32>
    %66 = math.absf %65 : vector<2x512xf32>
    %67 = vector.broadcast %25 : f32 to vector<2x512xf32>
    %68 = arith.mulf %67, %66 : vector<2x512xf32>
    %69 = arith.addf %57, %68 : vector<2x512xf32>
    %70 = vector.broadcast %6 : f32 to vector<2x512xf32>
    %71 = arith.subf %42, %70 : vector<2x512xf32>
    %72 = math.absf %71 : vector<2x512xf32>
    %73 = vector.broadcast %26 : f32 to vector<2x512xf32>
    %74 = arith.mulf %73, %72 : vector<2x512xf32>
    %75 = arith.addf %63, %74 : vector<2x512xf32>
    %76 = vector.broadcast %7 : f32 to vector<2x512xf32>
    %77 = arith.subf %42, %76 : vector<2x512xf32>
    %78 = math.absf %77 : vector<2x512xf32>
    %79 = vector.broadcast %27 : f32 to vector<2x512xf32>
    %80 = arith.mulf %79, %78 : vector<2x512xf32>
    %81 = arith.addf %69, %80 : vector<2x512xf32>
    %82 = vector.broadcast %8 : f32 to vector<2x512xf32>
    %83 = arith.subf %42, %82 : vector<2x512xf32>
    %84 = math.absf %83 : vector<2x512xf32>
    %85 = vector.broadcast %28 : f32 to vector<2x512xf32>
    %86 = arith.mulf %85, %84 : vector<2x512xf32>
    %87 = arith.addf %75, %86 : vector<2x512xf32>
    %88 = vector.broadcast %9 : f32 to vector<2x512xf32>
    %89 = arith.subf %42, %88 : vector<2x512xf32>
    %90 = math.absf %89 : vector<2x512xf32>
    %91 = vector.broadcast %29 : f32 to vector<2x512xf32>
    %92 = arith.mulf %91, %90 : vector<2x512xf32>
    %93 = arith.addf %81, %92 : vector<2x512xf32>
    %94 = vector.broadcast %10 : f32 to vector<2x512xf32>
    %95 = arith.subf %42, %94 : vector<2x512xf32>
    %96 = math.absf %95 : vector<2x512xf32>
    %97 = vector.broadcast %30 : f32 to vector<2x512xf32>
    %98 = arith.mulf %97, %96 : vector<2x512xf32>
    %99 = arith.addf %87, %98 : vector<2x512xf32>
    %100 = vector.broadcast %11 : f32 to vector<2x512xf32>
    %101 = arith.subf %42, %100 : vector<2x512xf32>
    %102 = math.absf %101 : vector<2x512xf32>
    %103 = vector.broadcast %31 : f32 to vector<2x512xf32>
    %104 = arith.mulf %103, %102 : vector<2x512xf32>
    %105 = arith.addf %93, %104 : vector<2x512xf32>
    %106 = vector.broadcast %12 : f32 to vector<2x512xf32>
    %107 = arith.subf %42, %106 : vector<2x512xf32>
    %108 = math.absf %107 : vector<2x512xf32>
    %109 = vector.broadcast %32 : f32 to vector<2x512xf32>
    %110 = arith.mulf %109, %108 : vector<2x512xf32>
    %111 = arith.addf %99, %110 : vector<2x512xf32>
    %112 = vector.broadcast %13 : f32 to vector<2x512xf32>
    %113 = arith.subf %42, %112 : vector<2x512xf32>
    %114 = math.absf %113 : vector<2x512xf32>
    %115 = vector.broadcast %33 : f32 to vector<2x512xf32>
    %116 = arith.mulf %115, %114 : vector<2x512xf32>
    %117 = arith.addf %105, %116 : vector<2x512xf32>
    %118 = vector.broadcast %14 : f32 to vector<2x512xf32>
    %119 = arith.subf %42, %118 : vector<2x512xf32>
    %120 = math.absf %119 : vector<2x512xf32>
    %121 = vector.broadcast %34 : f32 to vector<2x512xf32>
    %122 = arith.mulf %121, %120 : vector<2x512xf32>
    %123 = arith.addf %111, %122 : vector<2x512xf32>
    %124 = vector.broadcast %15 : f32 to vector<2x512xf32>
    %125 = arith.subf %42, %124 : vector<2x512xf32>
    %126 = math.absf %125 : vector<2x512xf32>
    %127 = vector.broadcast %35 : f32 to vector<2x512xf32>
    %128 = arith.mulf %127, %126 : vector<2x512xf32>
    %129 = arith.addf %117, %128 : vector<2x512xf32>
    %130 = vector.broadcast %16 : f32 to vector<2x512xf32>
    %131 = arith.subf %42, %130 : vector<2x512xf32>
    %132 = math.absf %131 : vector<2x512xf32>
    %133 = vector.broadcast %36 : f32 to vector<2x512xf32>
    %134 = arith.mulf %133, %132 : vector<2x512xf32>
    %135 = arith.addf %123, %134 : vector<2x512xf32>
    %136 = vector.broadcast %17 : f32 to vector<2x512xf32>
    %137 = arith.subf %42, %136 : vector<2x512xf32>
    %138 = math.absf %137 : vector<2x512xf32>
    %139 = vector.broadcast %37 : f32 to vector<2x512xf32>
    %140 = arith.mulf %139, %138 : vector<2x512xf32>
    %141 = arith.addf %129, %140 : vector<2x512xf32>
    %142 = vector.broadcast %18 : f32 to vector<2x512xf32>
    %143 = arith.subf %42, %142 : vector<2x512xf32>
    %144 = math.absf %143 : vector<2x512xf32>
    %145 = vector.broadcast %38 : f32 to vector<2x512xf32>
    %146 = arith.mulf %145, %144 : vector<2x512xf32>
    %147 = arith.addf %135, %146 : vector<2x512xf32>
    %148 = vector.broadcast %19 : f32 to vector<2x512xf32>
    %149 = arith.subf %42, %148 : vector<2x512xf32>
    %150 = math.absf %149 : vector<2x512xf32>
    %151 = vector.broadcast %39 : f32 to vector<2x512xf32>
    %152 = arith.mulf %151, %150 : vector<2x512xf32>
    %153 = arith.addf %141, %152 : vector<2x512xf32>
    %154 = vector.broadcast %20 : f32 to vector<2x512xf32>
    %155 = arith.subf %42, %154 : vector<2x512xf32>
    %156 = math.absf %155 : vector<2x512xf32>
    %157 = vector.broadcast %40 : f32 to vector<2x512xf32>
    %158 = arith.mulf %157, %156 : vector<2x512xf32>
    %159 = arith.addf %147, %158 : vector<2x512xf32>
    %160 = vector.broadcast %21 : f32 to vector<2x512xf32>
    %161 = arith.subf %42, %160 : vector<2x512xf32>
    %162 = math.absf %161 : vector<2x512xf32>
    %163 = vector.broadcast %41 : f32 to vector<2x512xf32>
    %164 = arith.mulf %163, %162 : vector<2x512xf32>
    %165 = arith.addf %153, %164 : vector<2x512xf32>
    %166 = arith.addf %159, %165 : vector<2x512xf32>
    %167 = math.tanh %166 : vector<2x512xf32>
    %cst = arith.constant 5.000000e-01 : f32
    %168 = vector.broadcast %cst : f32 to vector<2x512xf32>
    %169 = arith.mulf %168, %167 : vector<2x512xf32>
    %cst_24 = arith.constant 5.000000e-01 : f32
    %170 = vector.broadcast %cst_24 : f32 to vector<2x512xf32>
    %171 = arith.addf %169, %170 : vector<2x512xf32>
    %c0_25 = arith.constant 0 : index
    %c0_26 = arith.constant 0 : index
    %172 = vector.load %arg5[%c0_25, %c0_26] : memref<2x512xf32, #tpu.memory_space<vmem>>, vector<2x512xf32>
    tpu.vector_store %arg5[%c0_25, %c0_26], %171 {strides = array<i32>} : memref<2x512xf32, #tpu.memory_space<vmem>>, vector<2x512xf32>,
    return
  }
  func.func @transform_0(%arg0: i32) -> i32 {
    %c0_i32 = arith.constant 0 : i32
    %c0_i32_0 = arith.constant 0 : i32
    return %c0_i32 : i32
  }
  func.func @transform_1(%arg0: i32) -> i32 {
    %c0_i32 = arith.constant 0 : i32
    %c0_i32_0 = arith.constant 0 : i32
    return %c0_i32 : i32
  }
  func.func @transform_2(%arg0: i32) -> i32 {
    %c0_i32 = arith.constant 0 : i32
    %c0_i32_0 = arith.constant 0 : i32
    return %c0_i32 : i32
  }
  func.func @transform_3(%arg0: i32) -> (i32, i32) {
    %c0_i32 = arith.constant 0 : i32
    %c0_i32_0 = arith.constant 0 : i32
    return %arg0, %c0_i32 : i32, i32
  }
  func.func @transform_4(%arg0: i32) -> (i32, i32) {
    %c0_i32 = arith.constant 0 : i32
    %c0_i32_0 = arith.constant 0 : i32
    return %arg0, %c0_i32 : i32, i32
  }
}

</mosaic_0001>

<llo_original>
// kernel: tpu_custom_call.1
$region0: #{tpu_custom_call.1}
  #allocation0 [shape = 'u32[]', space=smem, size = 0x4, offset = 0x4, fixed_abs, tag = 'smem constant byte address 0x4 - core index']
  #allocation1 [shape = 'u32[144,128]{1,0:T(1,128)}', space=vmem, size = 0x12000, scoped, tag = 'internal scratch']
  %s0 = inlined_call_operand.hbm [shape: f32[20], index: 0, kind: input, shape index: {}]
  %s1 = inlined_call_operand.vmem [shape: f32[20], index: 1, kind: input, shape index: {}]
  %s2 = inlined_call_operand.vmem [shape: f32[2], index: 2, kind: input, shape index: {}]
  %s3 = inlined_call_operand.vmem [shape: f32[2,512], index: 3, kind: input, shape index: {}]
  %s4 = inlined_call_operand.hbm [shape: f32[2,512], index: 4, kind: output, shape index: {}]
  %s5 = sld [smem:[#allocation0]]
  $region38: #{tpu_custom_call.1} parent=0
    _
  %s7 = ssub.s32 1, %s5
  %s8 = scalar_select 0, %s7, %s5
  $region1: #{tpu_custom_call.1} parent=0
    #allocation2 [shape = 'u8[512]{0}', space=smem, size = 0x200, scoped, tag = 'input window, operand 0, single buffered']
    #allocation3 [shape = 's32[1]{0}', space=sflag, size = 0x4, scoped, tag = 'scoped memory for tpu_custom_call.1']
    #allocation4 [shape = 's32[1]{0}', space=sflag, size = 0x4, scoped, tag = 'scoped memory for tpu_custom_call.1']
    #allocation5 [shape = 's32[1]{0}', space=sflag, size = 0x4, scoped, tag = 'scoped memory for tpu_custom_call.1']
    #allocation6 [shape = 'u8[512]{0}', space=smem, size = 0x200, scoped, tag = 'input window, operand 1, single buffered']
    #allocation7 [shape = 'u8[512]{0}', space=smem, size = 0x200, scoped, tag = 'input window, operand 2, single buffered']
    #allocation8 [shape = 's32[1]{0}', space=sflag, size = 0x4, scoped, tag = 'scoped memory for tpu_custom_call.1']
    #allocation9 [shape = 'u8[4096]{0}', space=vmem, size = 0x1000, scoped, tag = 'output window, operand 0, single buffered']
    %9 = vsyncpa [#allocation4], 0
    %10 = vsyncpa [#allocation5], 0
    %11 = vsyncpa [#allocation8], 0
    %12 = vsyncpa [#allocation3], 0
    // Predicated region
    $region2: #{tpu_custom_call.1} parent=1 // pred_check
      _
    $region3: #{tpu_custom_call.1} parent=1 // pred_check_branch
      %14 = sbr.rel (0) target = $region5
    $region4: #{tpu_custom_call.1} parent=1 // pred_region
      %s16 = ssub.s32 16, 16
      %17 = vsyncadd [#allocation4], %s16
      %20 = dma.hbm_to_smem %s0, 16, [#allocation2], [#allocation4]
    $region5: #{tpu_custom_call.1} parent=1 // pred_fallthru
      _
    // Predicated region
    $region6: #{tpu_custom_call.1} parent=1 // pred_check
      _
    $region7: #{tpu_custom_call.1} parent=1 // pred_check_branch
      %22 = sbr.rel (0) target = $region9
    $region8: #{tpu_custom_call.1} parent=1 // pred_region
      %s24 = ssub.s32 16, 16
      %25 = vsyncadd [#allocation5], %s24
      %s27 = sshll.u32 %s1, 4
      %s28 = int_to_ptr.vmem [resolvable:$true] %s27
      %30 = dma.vmem_to_smem %s28, 16, [#allocation6], [#allocation5]
    $region9: #{tpu_custom_call.1} parent=1 // pred_fallthru
      _
    // Predicated region
    $region10: #{tpu_custom_call.1} parent=1 // pred_check
      _
    $region11: #{tpu_custom_call.1} parent=1 // pred_check_branch
      %32 = sbr.rel (0) target = $region13
    $region12: #{tpu_custom_call.1} parent=1 // pred_region
      %s34 = ssub.s32 16, 16
      %35 = vsyncadd [#allocation8], %s34
      %s37 = sshll.u32 %s2, 4
      %s38 = int_to_ptr.vmem [resolvable:$true] %s37
      %40 = dma.vmem_to_smem %s38, 16, [#allocation7], [#allocation8]
    $region13: #{tpu_custom_call.1} parent=1 // pred_fallthru
      _
    // Predicated region
    $region14: #{tpu_custom_call.1} parent=1 // pred_check
      _
    $region15: #{tpu_custom_call.1} parent=1 // pred_check_branch
      %42 = sbr.rel (0) target = $region17
    $region16: #{tpu_custom_call.1} parent=1 // pred_region
      _
    $region17: #{tpu_custom_call.1} parent=1 // pred_fallthru
      _
    // Predicated region
    $region18: #{tpu_custom_call.1} parent=1 // pred_check
      _
    $region19: #{tpu_custom_call.1} parent=1 // pred_check_branch
      %44 = sbr.rel (0) target = $region21
    $region20: #{tpu_custom_call.1} parent=1 // pred_region
      %45 = dma.done [#allocation4], 16
    $region21: #{tpu_custom_call.1} parent=1 // pred_fallthru
      _
    // Predicated region
    $region22: #{tpu_custom_call.1} parent=1 // pred_check
      _
    $region23: #{tpu_custom_call.1} parent=1 // pred_check_branch
      %47 = sbr.rel (0) target = $region25
    $region24: #{tpu_custom_call.1} parent=1 // pred_region
      %48 = dma.done [#allocation5], 16
    $region25: #{tpu_custom_call.1} parent=1 // pred_fallthru
      _
    // Predicated region
    $region26: #{tpu_custom_call.1} parent=1 // pred_check
      _
    $region27: #{tpu_custom_call.1} parent=1 // pred_check_branch
      %50 = sbr.rel (0) target = $region29
    $region28: #{tpu_custom_call.1} parent=1 // pred_region
      %51 = dma.done [#allocation8], 16
    $region29: #{tpu_custom_call.1} parent=1 // pred_fallthru
      _
    %52 = sfence
    %s53 = sld [smem:[#allocation7]]
    %s54 = sld [smem:[#allocation7 + $0x1]]
    %s55 = sld [smem:[#allocation2]]
    %s56 = sld [smem:[#allocation2 + $0x1]]
    %s57 = sld [smem:[#allocation2 + $0x2]]
    %s58 = sld [smem:[#allocation2 + $0x3]]
    %s59 = sld [smem:[#allocation2 + $0x4]]
    %s60 = sld [smem:[#allocation2 + $0x5]]
    %s61 = sld [smem:[#allocation2 + $0x6]]
    %s62 = sld [smem:[#allocation2 + $0x7]]
    %s63 = sld [smem:[#allocation2 + $0x8]]
    %s64 = sld [smem:[#allocation2 + $0x9]]
    %s65 = sld [smem:[#allocation2 + $0xa]]
    %s66 = sld [smem:[#allocation2 + $0xb]]
    %s67 = sld [smem:[#allocation2 + $0xc]]
    %s68 = sld [smem:[#allocation2 + $0xd]]
    %s69 = sld [smem:[#allocation2 + $0xe]]
    %s70 = sld [smem:[#allocation2 + $0xf]]
    %s71 = sld [smem:[#allocation2 + $0x10]]
    %s72 = sld [smem:[#allocation2 + $0x11]]
    %s73 = sld [smem:[#allocation2 + $0x12]]
    %s74 = sld [smem:[#allocation2 + $0x13]]
    %s75 = sld [smem:[#allocation6]]
    %s76 = sld [smem:[#allocation6 + $0x1]]
    %s77 = sld [smem:[#allocation6 + $0x2]]
    %s78 = sld [smem:[#allocation6 + $0x3]]
    %s79 = sld [smem:[#allocation6 + $0x4]]
    %s80 = sld [smem:[#allocation6 + $0x5]]
    %s81 = sld [smem:[#allocation6 + $0x6]]
    %s82 = sld [smem:[#allocation6 + $0x7]]
    %s83 = sld [smem:[#allocation6 + $0x8]]
    %s84 = sld [smem:[#allocation6 + $0x9]]
    %s85 = sld [smem:[#allocation6 + $0xa]]
    %s86 = sld [smem:[#allocation6 + $0xb]]
    %s87 = sld [smem:[#allocation6 + $0xc]]
    %s88 = sld [smem:[#allocation6 + $0xd]]
    %s89 = sld [smem:[#allocation6 + $0xe]]
    %s90 = sld [smem:[#allocation6 + $0xf]]
    %s91 = sld [smem:[#allocation6 + $0x10]]
    %s92 = sld [smem:[#allocation6 + $0x11]]
    %s93 = sld [smem:[#allocation6 + $0x12]]
    %s94 = sld [smem:[#allocation6 + $0x13]]
    %v95 = vld [vmem:[%s3] sm:$0xff]
    %v96 = vstv %s53
    %v97 = vmul.f32 %v96, %v95
    %v98 = vstv %s54
    %v99 = vadd.f32 %v97, %v98
    %v100 = vstv %s55
    %v101 = vsub.f32 %v95, %v100
    %v102 = vand.u32 2147483647, %v101
    %v103 = vstv %s75
    %v104 = vmul.f32 %v103, %v102
    %v105 = vstv %s56
    %v106 = vsub.f32 %v95, %v105
    %v107 = vand.u32 2147483647, %v106
    %v108 = vstv %s76
    %v109 = vmul.f32 %v108, %v107
    %v110 = vadd.f32 %v104, %v109
    %v111 = vstv %s57
    %v112 = vsub.f32 %v95, %v111
    %v113 = vand.u32 2147483647, %v112
    %v114 = vstv %s77
    %v115 = vmul.f32 %v114, %v113
    %v116 = vadd.f32 %v99, %v115
    %v117 = vstv %s58
    %v118 = vsub.f32 %v95, %v117
    %v119 = vand.u32 2147483647, %v118
    %v120 = vstv %s78
    %v121 = vmul.f32 %v120, %v119
    %v122 = vadd.f32 %v110, %v121
    %v123 = vstv %s59
    %v124 = vsub.f32 %v95, %v123
    %v125 = vand.u32 2147483647, %v124
    %v126 = vstv %s79
    %v127 = vmul.f32 %v126, %v125
    %v128 = vadd.f32 %v116, %v127
    %v129 = vstv %s60
    %v130 = vsub.f32 %v95, %v129
    %v131 = vand.u32 2147483647, %v130
    %v132 = vstv %s80
    %v133 = vmul.f32 %v132, %v131
    %v134 = vadd.f32 %v122, %v133
    %v135 = vstv %s61
    %v136 = vsub.f32 %v95, %v135
    %v137 = vand.u32 2147483647, %v136
    %v138 = vstv %s81
    %v139 = vmul.f32 %v138, %v137
    %v140 = vadd.f32 %v128, %v139
    %v141 = vstv %s62
    %v142 = vsub.f32 %v95, %v141
    %v143 = vand.u32 2147483647, %v142
    %v144 = vstv %s82
    %v145 = vmul.f32 %v144, %v143
    %v146 = vadd.f32 %v134, %v145
    %v147 = vstv %s63
    %v148 = vsub.f32 %v95, %v147
    %v149 = vand.u32 2147483647, %v148
    %v150 = vstv %s83
    %v151 = vmul.f32 %v150, %v149
    %v152 = vadd.f32 %v140, %v151
    %v153 = vstv %s64
    %v154 = vsub.f32 %v95, %v153
    %v155 = vand.u32 2147483647, %v154
    %v156 = vstv %s84
    %v157 = vmul.f32 %v156, %v155
    %v158 = vadd.f32 %v146, %v157
    %v159 = vstv %s65
    %v160 = vsub.f32 %v95, %v159
    %v161 = vand.u32 2147483647, %v160
    %v162 = vstv %s85
    %v163 = vmul.f32 %v162, %v161
    %v164 = vadd.f32 %v152, %v163
    %v165 = vstv %s66
    %v166 = vsub.f32 %v95, %v165
    %v167 = vand.u32 2147483647, %v166
    %v168 = vstv %s86
    %v169 = vmul.f32 %v168, %v167
    %v170 = vadd.f32 %v158, %v169
    %v171 = vstv %s67
    %v172 = vsub.f32 %v95, %v171
    %v173 = vand.u32 2147483647, %v172
    %v174 = vstv %s87
    %v175 = vmul.f32 %v174, %v173
    %v176 = vadd.f32 %v164, %v175
    %v177 = vstv %s68
    %v178 = vsub.f32 %v95, %v177
    %v179 = vand.u32 2147483647, %v178
    %v180 = vstv %s88
    %v181 = vmul.f32 %v180, %v179
    %v182 = vadd.f32 %v170, %v181
    %v183 = vstv %s69
    %v184 = vsub.f32 %v95, %v183
    %v185 = vand.u32 2147483647, %v184
    %v186 = vstv %s89
    %v187 = vmul.f32 %v186, %v185
    %v188 = vadd.f32 %v176, %v187
    %v189 = vstv %s70
    %v190 = vsub.f32 %v95, %v189
    %v191 = vand.u32 2147483647, %v190
    %v192 = vstv %s90
    %v193 = vmul.f32 %v192, %v191
    %v194 = vadd.f32 %v182, %v193
    %v195 = vstv %s71
    %v196 = vsub.f32 %v95, %v195
    %v197 = vand.u32 2147483647, %v196
    %v198 = vstv %s91
    %v199 = vmul.f32 %v198, %v197
    %v200 = vadd.f32 %v188, %v199
    %v201 = vstv %s72
    %v202 = vsub.f32 %v95, %v201
    %v203 = vand.u32 2147483647, %v202
    %v204 = vstv %s92
    %v205 = vmul.f32 %v204, %v203
    %v206 = vadd.f32 %v194, %v205
    %v207 = vstv %s73
    %v208 = vsub.f32 %v95, %v207
    %v209 = vand.u32 2147483647, %v208
    %v210 = vstv %s93
    %v211 = vmul.f32 %v210, %v209
    %v212 = vadd.f32 %v200, %v211
    %v213 = vstv %s74
    %v214 = vsub.f32 %v95, %v213
    %v215 = vand.u32 2147483647, %v214
    %v216 = vstv %s94
    %v217 = vmul.f32 %v216, %v215
    %v218 = vadd.f32 %v206, %v217
    %v219 = vadd.f32 %v212, %v218
    %v220 = vtanh.pop %v219
    %v221 = vmul.f32 %v220, 0.5
    %v222 = vadd.f32 %v221, 0.5
    %223 = vst [vmem:[#allocation9] sm:$0xff] %v222
    // Predicated region
    $region30: #{tpu_custom_call.1} parent=1 // pred_check
      _
    $region31: #{tpu_custom_call.1} parent=1 // pred_check_branch
      %225 = sbr.rel (0) target = $region33
    $region32: #{tpu_custom_call.1} parent=1 // pred_region
      %s227 = ssub.s32 128, 128
      %228 = vsyncadd [#allocation3], %s227
      %s230 = sshll.u32 [#allocation9], 4
      %s231 = int_to_ptr.vmem [resolvable:$true] %s230
      %233 = dma.vmem_to_hbm [thread:$0]  %s231, 128, %s4, [#allocation3]
    $region33: #{tpu_custom_call.1} parent=1 // pred_fallthru
      _
    // Predicated region
    $region34: #{tpu_custom_call.1} parent=1 // pred_check
      _
    $region35: #{tpu_custom_call.1} parent=1 // pred_check_branch
      %235 = sbr.rel (0) target = $region37
    $region36: #{tpu_custom_call.1} parent=1 // pred_region
      %236 = dma.done [#allocation3], 128
    $region37: #{tpu_custom_call.1} parent=1 // pred_fallthru
      _
    %237 = vsyncpa [#allocation3], 1
    %238 = vsyncpa [#allocation4], 1
    %239 = vsyncpa [#allocation5], 1
    %240 = vsyncpa [#allocation8], 1

</llo_original>
